<compile_context>
chip_gen: v6e
topology: v6e:2x2x1
jax: 0.10.0
libtpu: 0.0.40
codegen_flags: <defaults>
</compile_context>

<pallas_src>
import jax
import jax.numpy as jnp
from jax.experimental import pallas as pl
from jax.experimental.pallas import tpu as pltpu


def _pick_tile_n(out_dim, max_tile=3072):
    """Lane-dense tile over the VQ*Q output dim; full dim when it is small.

    Prefers multiples of 256 (MXU N on v6e/v7x), falls back to 128 (v5e)."""
    if out_dim <= max_tile:
        return out_dim
    for step in (256, 128):
        start = max_tile - (max_tile % step)
        for tn in range(start, step - 1, -step):
            if out_dim % tn == 0:
                return tn
    return out_dim   # fallback: single (possibly large) tile


def _vmem_limit(block_bytes, margin=4 * 1024 * 1024):
    """Scoped-VMEM cap from actual double-buffered block footprint."""
    total = 2 * int(block_bytes) + margin
    total = -(-total // (1 << 20)) * (1 << 20)          # round up to MiB
    return int(min(max(total, 8 << 20), 48 << 20))      # headroom on v7x 64 MiB


# -----------------------------------------------------------------------------
# Stage 2 (shared): batched second Linear, w2 streamed exactly once
# -----------------------------------------------------------------------------
def _second_linear_kernel(h_ref, w2_ref, b2_ref, o_ref):
    # h (M, Q) bf16 resident, w2 (Q, tn) bf16, b2 (1, tn) f32 -> o (M, tn) f32
    o_ref[...] = jnp.dot(h_ref[...], w2_ref[...],
                         preferred_element_type=jnp.float32) + b2_ref[...]


def _second_linear_pallas(h2d, w2, b2):
    """[M, Q] bf16 @ [Q, O] + b -> [M, O] f32, O tiled lane-dense."""
    M, Q = h2d.shape
    O = w2.shape[1]
    tn = _pick_tile_n(O)
    n_tiles = O // tn

    w2b = w2.astype(jnp.bfloat16)
    b2r = b2.reshape(1, O).astype(jnp.float32)

    flops = int(2 * M * Q * O)
    bytes_accessed = int(h2d.size * 2 + w2b.size * 2 + b2r.size * 4
                         + M * O * 4)
    block_bytes = M * Q * 2 + Q * tn * 2 + tn * 4 + M * tn * 4

    return pl.pallas_call(
        _second_linear_kernel,
        out_shape=jax.ShapeDtypeStruct((M, O), jnp.float32),
        grid=(n_tiles,),
        in_specs=[
            pl.BlockSpec((M, Q), lambda n: (0, 0)),    # resident across tiles
            pl.BlockSpec((Q, tn), lambda n: (0, n)),   # each w2 tile DMA'd once
            pl.BlockSpec((1, tn), lambda n: (0, n)),
        ],
        out_specs=pl.BlockSpec((M, tn), lambda n: (0, n)),
        compiler_params=pltpu.CompilerParams(
            dimension_semantics=("parallel",),         # shards across v7x cores
            vmem_limit_bytes=_vmem_limit(block_bytes)),
        cost_estimate=pl.CostEstimate(flops=flops, transcendentals=0,
                                      bytes_accessed=bytes_accessed),
    )(h2d, w2b, b2r)


# -----------------------------------------------------------------------------
# Stage 1a: proposal selection (IoU + argmax + one-hot gather) + Linear + ReLU
# -----------------------------------------------------------------------------
def _box_select_mlp1_kernel(pf_ref, pminT_ref, pmaxT_ref, qmin_ref, qmax_ref,
                            mask_ref, w1_ref, b1_ref, h_ref):
    # pf (1,nprop,E) bf16 | pminT/pmaxT (1,3,nprop) f32 | qmin/qmax (1,nq,3) f32
    # mask (1,1,nprop) f32 | w1 (E,Q) bf16 | b1 (1,Q) f32 | h (1,nq,Q) bf16
    pminT = pminT_ref[0]                   # [3, nprop]
    pmaxT = pmaxT_ref[0]                   # [3, nprop]
    qmin = qmin_ref[0]                     # [nq, 3]
    qmax = qmax_ref[0]                     # [nq, 3]
    nq = qmin.shape[0]
    nprop = pminT.shape[1]

    dq = qmax - qmin                                           # [nq, 3]
    dp = pmaxT - pminT                                         # [3, nprop]
    vol_q = dq[:, 0:1] * dq[:, 1:2] * dq[:, 2:3]               # [nq, 1]
    vol_p = dp[0:1, :] * dp[1:2, :] * dp[2:3, :]               # [1, nprop]

    # TODO(synk): exact box3d_iou_batch_tensor (convex-hull 3D IoU for rotated
    # boxes) has no provided reference; axis-aligned IoU of the 8 corners is
    # used instead.
    inter = jnp.ones((nq, nprop), jnp.float32)
    for d in range(3):                                         # static unroll
        qlo = qmin[:, d:d + 1]
        qhi = qmax[:, d:d + 1]
        plo = pminT[d:d + 1, :]
        phi = pmaxT[d:d + 1, :]
        inter = inter * jnp.maximum(jnp.minimum(qhi, phi) -
                                    jnp.maximum(qlo, plo), 0.0)

    union = vol_q + vol_p - inter
    iou = inter / jnp.maximum(union, 1e-8)
    iou = iou * mask_ref[0]                                    # background -> 0

    # first-occurrence argmax over proposals as a one-hot matrix (MXU gather)
    m = jnp.max(iou, axis=-1, keepdims=True)                   # [nq, 1]
    idx = jax.lax.broadcasted_iota(jnp.int32, (nq, nprop), 1)
    cand = jnp.where(iou == m, idx, nprop)
    best = jnp.min(cand, axis=-1, keepdims=True)               # [nq, 1]
    onehot = (idx == best).astype(jnp.bfloat16)                # [nq, nprop]

    x = jnp.dot(onehot, pf_ref[0],
                preferred_element_type=jnp.float32)            # [nq, E]
    h = jnp.dot(x.astype(jnp.bfloat16), w1_ref[...],
                preferred_element_type=jnp.float32) + b1_ref[...]
    h_ref[0] = jnp.maximum(h, 0.0).astype(jnp.bfloat16)        # ReLU in f32


def box_prompt_pallas(prop_feat, prop_box_corners, prop_sem_mask, box_query,
                      w1, b1, w2, b2):
    """[B,nprop,E], [B,nprop,8,3], [B,nprop], [B,nq,8,3] -> [B,nq,VQ*Q] f32."""
    B, nprop, E = prop_feat.shape
    nq = box_query.shape[1]
    Q = w1.shape[1]
    O = w2.shape[1]

    # corner -> axis-aligned box reduction (cheap glue)
    pminT = jnp.transpose(prop_box_corners.min(axis=2), (0, 2, 1))  # [B,3,nprop]
    pmaxT = jnp.transpose(prop_box_corners.max(axis=2), (0, 2, 1))  # [B,3,nprop]
    qmin = box_query.min(axis=2)                                    # [B,nq,3]
    qmax = box_query.max(axis=2)                                    # [B,nq,3]
    mask = prop_sem_mask.reshape(B, 1, nprop).astype(jnp.float32)

    pf = prop_feat.astype(jnp.bfloat16)
    w1b = w1.astype(jnp.bfloat16)
    b1r = b1.reshape(1, Q).astype(jnp.float32)

    flops1 = int(B * (2 * nq * nprop * E + 2 * nq * E * Q + 32 * nq * nprop))
    bytes1 = int(pf.size * 2
                 + (pminT.size + pmaxT.size + qmin.size + qmax.size
                    + mask.size) * 4
                 + w1b.size * 2 + b1r.size * 4 + B * nq * Q * 2)
    block1 = (nprop * E * 2 + 2 * 3 * nprop * 4 + 2 * nq * 3 * 4 + nprop * 4
              + E * Q * 2 + Q * 4 + nq * Q * 2)

    h = pl.pallas_call(
        _box_select_mlp1_kernel,
        out_shape=jax.ShapeDtypeStruct((B, nq, Q), jnp.bfloat16),
        grid=(B,),
        in_specs=[
            pl.BlockSpec((1, nprop, E), lambda b: (b, 0, 0)),
            pl.BlockSpec((1, 3, nprop), lambda b: (b, 0, 0)),
            pl.BlockSpec((1, 3, nprop), lambda b: (b, 0, 0)),
            pl.BlockSpec((1, nq, 3), lambda b: (b, 0, 0)),
            pl.BlockSpec((1, nq, 3), lambda b: (b, 0, 0)),
            pl.BlockSpec((1, 1, nprop), lambda b: (b, 0, 0)),
            pl.BlockSpec((E, Q), lambda b: (0, 0)),
            pl.BlockSpec((1, Q), lambda b: (0, 0)),
        ],
        out_specs=pl.BlockSpec((1, nq, Q), lambda b: (b, 0, 0)),
        compiler_params=pltpu.CompilerParams(
            dimension_semantics=("parallel",),
            vmem_limit_bytes=_vmem_limit(block1)),
        cost_estimate=pl.CostEstimate(flops=flops1, transcendentals=0,
                                      bytes_accessed=bytes1),
    )(pf, pminT, pmaxT, qmin, qmax, mask, w1b, b1r)

    out2d = _second_linear_pallas(h.reshape(B * nq, Q), w2, b2)     # [B*nq, O]
    return out2d.reshape(B, nq, O)


# -----------------------------------------------------------------------------
# Stage 1b: Fourier positional embedding + Linear + ReLU (click path)
# -----------------------------------------------------------------------------
def _click_fourier_mlp1_kernel(xyz_ref, pcmin_ref, pcmax_ref, gb_ref,
                               w1s_ref, w1c_ref, b1_ref, h_ref):
    # xyz (1,nc,3) f32 | pcmin/pcmax (1,1,3) f32 | gb (3,E//2) f32
    # w1s/w1c (E//2,Q) bf16 | b1 (1,Q) f32 | h (1,nc,Q) bf16
    xyz = xyz_ref[0]                                          # [nc, 3]
    pcmin = pcmin_ref[0]                                      # [1, 3]
    pcmax = pcmax_ref[0]                                      # [1, 3]
    scale = jnp.maximum(pcmax - pcmin, 1e-8)                  # guard degenerate dim
    xyz_n = (xyz - pcmin) / scale * (2.0 * jnp.pi)            # [nc, 3]

    gb = gb_ref[...]                                          # [3, E//2]
    # K=3 projection as VPU broadcast-FMAs (no MXU push for trivial work)
    proj = (xyz_n[:, 0:1] * gb[0:1, :]
            + xyz_n[:, 1:2] * gb[1:2, :]
            + xyz_n[:, 2:3] * gb[2:3, :])                     # [nc, E//2] f32

    sin_p = jnp.sin(proj).astype(jnp.bfloat16)                # EUP in f32
    cos_p = jnp.cos(proj).astype(jnp.bfloat16)

    # emb = concat([sin, cos], -1); emb @ w1 == sin @ w1[:E/2] + cos @ w1[E/2:]
    h = (jnp.dot(sin_p, w1s_ref[...], preferred_element_type=jnp.float32)
         + jnp.dot(cos_p, w1c_ref[...], preferred_element_type=jnp.float32)
         + b1_ref[...])
    h_ref[0] = jnp.maximum(h, 0.0).astype(jnp.bfloat16)       # ReLU in f32


def click_prompt_pallas(click_query, point_cloud_dims, gauss_B, w1, b1, w2, b2):
    """[B,nc,3] -> [B,nc,VQ*Q] f32."""
    B, nc, _ = click_query.shape
    E, Q = w1.shape
    O = w2.shape[1]
    E_half = E // 2

    pc_min = point_cloud_dims[0].reshape(B, 1, 3).astype(jnp.float32)
    pc_max = point_cloud_dims[1].reshape(B, 1, 3).astype(jnp.float32)
    gb = gauss_B[:, :E_half].astype(jnp.float32)               # [3, E//2]

    xyz = click_query.astype(jnp.float32)
    # pre-split first-layer weight: no in-kernel slice of a packed bf16 value
    w1s = w1[:E_half, :].astype(jnp.bfloat16)
    w1c = w1[E_half:, :].astype(jnp.bfloat16)
    b1r = b1.reshape(1, Q).astype(jnp.float32)

    flops1 = int(B * (2 * nc * 3 * E_half + 2 * nc * E * Q + 16 * nc))
    transc = int(B * nc * E)
    bytes1 = int(xyz.size * 4 + (pc_min.size + pc_max.size + gb.size) * 4
                 + (w1s.size + w1c.size) * 2 + b1r.size * 4 + B * nc * Q * 2)
    block1 = (nc * 3 * 4 + 2 * 3 * 4 + 3 * E_half * 4
              + 2 * E_half * Q * 2 + Q * 4 + nc * Q * 2)

    h = pl.pallas_call(
        _click_fourier_mlp1_kernel,
        out_shape=jax.ShapeDtypeStruct((B, nc, Q), jnp.bfloat16),
        grid=(B,),
        in_specs=[
            pl.BlockSpec((1, nc, 3), lambda b: (b, 0, 0)),
            pl.BlockSpec((1, 1, 3), lambda b: (b, 0, 0)),
            pl.BlockSpec((1, 1, 3), lambda b: (b, 0, 0)),
            pl.BlockSpec((3, E_half), lambda b: (0, 0)),
            pl.BlockSpec((E_half, Q), lambda b: (0, 0)),
            pl.BlockSpec((E_half, Q), lambda b: (0, 0)),
            pl.BlockSpec((1, Q), lambda b: (0, 0)),
        ],
        out_specs=pl.BlockSpec((1, nc, Q), lambda b: (b, 0, 0)),
        compiler_params=pltpu.CompilerParams(
            dimension_semantics=("parallel",),
            vmem_limit_bytes=_vmem_limit(block1)),
        cost_estimate=pl.CostEstimate(flops=flops1, transcendentals=transc,
                                      bytes_accessed=bytes1),
    )(xyz, pc_min, pc_max, gb, w1s, w1c, b1r)

    out2d = _second_linear_pallas(h.reshape(B * nc, Q), w2, b2)     # [B*nc, O]
    return out2d.reshape(B, nc, O)


# -----------------------------------------------------------------------------
# PromptEncoder (parameters + forward)
# -----------------------------------------------------------------------------
def init_prompt_encoder_params(key, encoder_hidden_size, visual_nquery,
                               qformer_hidden_size):
    E, Q, VQ = encoder_hidden_size, qformer_hidden_size, visual_nquery
    ks = jax.random.split(key, 9)
    s1 = 1.0 / jnp.sqrt(E)
    s2 = 1.0 / jnp.sqrt(Q)
    return {
        "box_w1": jax.random.normal(ks[0], (E, Q), jnp.float32) * s1,
        "box_b1": jax.random.normal(ks[1], (Q,), jnp.float32) * 0.01,
        "box_w2": jax.random.normal(ks[2], (Q, VQ * Q), jnp.float32) * s2,
        "box_b2": jax.random.normal(ks[3], (VQ * Q,), jnp.float32) * 0.01,
        "click_w1": jax.random.normal(ks[4], (E, Q), jnp.float32) * s1,
        "click_b1": jax.random.normal(ks[5], (Q,), jnp.float32) * 0.01,
        "click_w2": jax.random.normal(ks[6], (Q, VQ * Q), jnp.float32) * s2,
        "click_b2": jax.random.normal(ks[7], (VQ * Q,), jnp.float32) * 0.01,
        # PositionEmbeddingCoordsSine("fourier") Gaussian projection buffer
        "gauss_B": jax.random.normal(ks[8], (3, E // 2), jnp.float32),
    }


def expand_prompt_representation(feat, mask, visual_nquery, qformer_hidden):
    B, nprompt = feat.shape[:2]
    if mask is None:
        mask = jnp.ones((B, nprompt), jnp.float32)
    mask = jnp.repeat(mask, visual_nquery, axis=1)          # [B, nprompt*VQ]
    feat = feat.reshape(B, nprompt * visual_nquery, qformer_hidden)
    return feat, mask


def prompt_encoder_forward(params, detector_output, point_cloud_dims,
                           visual_nquery, qformer_hidden_size,
                           encoder_hidden_size,
                           box_query=None, box_qmask=None,
                           click_query=None, click_qmask=None):
    sem_cls_logits = detector_output["sem_cls_logits"]
    ncls = sem_cls_logits.shape[-1]
    prop_sem_mask = (jnp.argmax(sem_cls_logits, axis=-1)
                     != ncls - 1).astype(jnp.float32)
    batch_size = sem_cls_logits.shape[0]

    visual_prompt = []
    visual_mask = []

    if box_query is not None:
        box_prompt = box_prompt_pallas(
            detector_output["prop_features"][-1],
            detector_output["box_corners"], prop_sem_mask, box_query,
            params["box_w1"], params["box_b1"],
            params["box_w2"], params["box_b2"])              # [B, nq, VQ*Q]
        box_prompt, box_qmask_e = expand_prompt_representation(
            box_prompt, box_qmask, visual_nquery, qformer_hidden_size)
        visual_prompt.append(box_prompt)
        visual_mask.append(box_qmask_e)

    if click_query is not None:
        click_prompt = click_prompt_pallas(
            click_query, point_cloud_dims, params["gauss_B"],
            params["click_w1"], params["click_b1"],
            params["click_w2"], params["click_b2"])          # [B, nc, VQ*Q]
        click_prompt, click_qmask_e = expand_prompt_representation(
            click_prompt, click_qmask, visual_nquery, qformer_hidden_size)
        visual_prompt.append(click_prompt)
        visual_mask.append(click_qmask_e)

    if not visual_prompt:  # the "zeros(batch, 0, qh)" empty prompt case
        return (jnp.zeros((batch_size, 0, qformer_hidden_size), jnp.float32),
                jnp.zeros((batch_size, 0), jnp.float32))

    prompt_feature = jnp.concatenate(visual_prompt, axis=1)
    prompt_mask = jnp.concatenate(visual_mask, axis=1)
    return prompt_feature, prompt_mask


# -----------------------------------------------------------------------------
# Demo / smoke test
# -----------------------------------------------------------------------------
def _make_boxes(key, batch, n):
    kc, ks = jax.random.split(key)
    center = jax.random.uniform(kc, (batch, n, 3), minval=-1.0, maxval=1.0)
    size = jax.random.uniform(ks, (batch, n, 3), minval=0.1, maxval=0.6)
    mn = center - size / 2.0
    mx = center + size / 2.0
    signs = jnp.array([[x, y, z] for x in (0.0, 1.0) for y in (0.0, 1.0)
                       for z in (0.0, 1.0)], jnp.float32)           # [8, 3]
    return mn[:, :, None, :] + signs[None, None] * (mx - mn)[:, :, None, :]


if __name__ == "__main__":
    key = jax.random.PRNGKey(0)
    ks = jax.random.split(key, 10)

    # small shapes consistent with the module
    batch = 2
    nproposal, ncls = 16, 10
    encoder_hidden_size = 32          # E
    qformer_hidden_size = 32          # Q
    visual_nquery = 4                 # VQ  (VQ*Q = 128 -> lane-dense output)
    nquery, nclick = 8, 8

    detector_output = {
        "sem_cls_logits": jax.random.normal(
            ks[0], (batch, nproposal, ncls), jnp.float32),
        "prop_features": jax.random.normal(
            ks[1], (3, batch, nproposal, encoder_hidden_size), jnp.float32),
        "box_corners": _make_boxes(ks[2], batch, nproposal),
    }
    point_cloud_dims = [jnp.full((batch, 3), -1.2, jnp.float32),
                        jnp.full((batch, 3), 1.2, jnp.float32)]
    box_query = _make_boxes(ks[3], batch, nquery)
    box_qmask = (jax.random.uniform(ks[4], (batch, nquery)) > 0.2
                 ).astype(jnp.float32)
    click_query = jax.random.uniform(ks[5], (batch, nclick, 3),
                                     minval=-1.0, maxval=1.0)
    click_qmask = jnp.ones((batch, nclick), jnp.float32)

    params = init_prompt_encoder_params(ks[6], encoder_hidden_size,
                                        visual_nquery, qformer_hidden_size)

    prompt_feature, prompt_mask = prompt_encoder_forward(
        params, detector_output, point_cloud_dims,
        visual_nquery, qformer_hidden_size, encoder_hidden_size,
        box_query=box_query, box_qmask=box_qmask,
        click_query=click_query, click_qmask=click_qmask)

    jax.block_until_ready((prompt_feature, prompt_mask))

    expected_tokens = (nquery + nclick) * visual_nquery
    assert prompt_feature.shape == (batch, expected_tokens,
                                    qformer_hidden_size), prompt_feature.shape
    assert prompt_mask.shape == (batch, expected_tokens), prompt_mask.shape
    assert bool(jnp.all(jnp.isfinite(prompt_feature)))
    print("KERNEL_OK")
</pallas_src>

<mosaic_0001>
module attributes {stable_mosaic.version = 11 : i64} {
  func.func @_box_select_mlp1_kernel(%arg0: i32, %arg1: memref<1x16x32xbf16, #tpu.memory_space<vmem>>, %arg2: memref<1x3x16xf32, #tpu.memory_space<vmem>>, %arg3: memref<1x3x16xf32, #tpu.memory_space<vmem>>, %arg4: memref<1x8x3xf32, #tpu.memory_space<vmem>>, %arg5: memref<1x8x3xf32, #tpu.memory_space<vmem>>, %arg6: memref<1x1x16xf32, #tpu.memory_space<vmem>>, %arg7: memref<32x32xbf16, #tpu.memory_space<vmem>>, %arg8: memref<1x32xf32, #tpu.memory_space<vmem>>, %arg9: memref<1x8x32xbf16, #tpu.memory_space<vmem>>) attributes {dimension_semantics = [#tpu.dimension_semantics<parallel>], iteration_bounds = array<i64: 2>, scalar_prefetch = 0 : i64, scratch_operands = 0 : i64, tpu.core_type = #tpu.core_type<tc>, window_params = [{transform_indices = @transform_0, window_bounds = array<i64: 1, 16, 32>}, {transform_indices = @transform_1, window_bounds = array<i64: 1, 3, 16>}, {transform_indices = @transform_2, window_bounds = array<i64: 1, 3, 16>}, {transform_indices = @transform_3, window_bounds = array<i64: 1, 8, 3>}, {transform_indices = @transform_4, window_bounds = array<i64: 1, 8, 3>}, {transform_indices = @transform_5, window_bounds = array<i64: 1, 1, 16>}, {pipeline_mode = #tpu.pipeline_mode<synchronous>, transform_indices = @transform_6, window_bounds = array<i64: 32, 32>}, {pipeline_mode = #tpu.pipeline_mode<synchronous>, transform_indices = @transform_7, window_bounds = array<i64: 1, 32>}, {transform_indices = @transform_8, window_bounds = array<i64: 1, 8, 32>}]} {
    %c0 = arith.constant 0 : index
    %c0_0 = arith.constant 0 : index
    %c0_1 = arith.constant 0 : index
    %0 = vector.load %arg2[%c0, %c0_0, %c0_1] : memref<1x3x16xf32, #tpu.memory_space<vmem>>, vector<1x3x16xf32>
    %1 = vector.shape_cast %0 : vector<1x3x16xf32> to vector<3x16xf32>
    %c0_2 = arith.constant 0 : index
    %c0_3 = arith.constant 0 : index
    %c0_4 = arith.constant 0 : index
    %2 = vector.load %arg3[%c0_2, %c0_3, %c0_4] : memref<1x3x16xf32, #tpu.memory_space<vmem>>, vector<1x3x16xf32>
    %3 = vector.shape_cast %2 : vector<1x3x16xf32> to vector<3x16xf32>
    %c0_5 = arith.constant 0 : index
    %c0_6 = arith.constant 0 : index
    %c0_7 = arith.constant 0 : index
    %4 = vector.load %arg4[%c0_5, %c0_6, %c0_7] : memref<1x8x3xf32, #tpu.memory_space<vmem>>, vector<1x8x3xf32>
    %5 = vector.shape_cast %4 : vector<1x8x3xf32> to vector<8x3xf32>
    %c0_8 = arith.constant 0 : index
    %c0_9 = arith.constant 0 : index
    %c0_10 = arith.constant 0 : index
    %6 = vector.load %arg5[%c0_8, %c0_9, %c0_10] : memref<1x8x3xf32, #tpu.memory_space<vmem>>, vector<1x8x3xf32>
    %7 = vector.shape_cast %6 : vector<1x8x3xf32> to vector<8x3xf32>
    %8 = arith.subf %7, %5 : vector<8x3xf32>
    %9 = arith.subf %3, %1 : vector<3x16xf32>
    %10 = vector.extract_strided_slice %8 {offsets = [0, 0], sizes = [8, 1], strides = [1, 1]} : vector<8x3xf32> to vector<8x1xf32>
    %11 = vector.extract_strided_slice %8 {offsets = [0, 1], sizes = [8, 1], strides = [1, 1]} : vector<8x3xf32> to vector<8x1xf32>
    %12 = arith.mulf %10, %11 : vector<8x1xf32>
    %13 = vector.extract_strided_slice %8 {offsets = [0, 2], sizes = [8, 1], strides = [1, 1]} : vector<8x3xf32> to vector<8x1xf32>
    %14 = arith.mulf %12, %13 : vector<8x1xf32>
    %15 = vector.extract_strided_slice %9 {offsets = [0, 0], sizes = [1, 16], strides = [1, 1]} : vector<3x16xf32> to vector<1x16xf32>
    %16 = vector.extract_strided_slice %9 {offsets = [1, 0], sizes = [1, 16], strides = [1, 1]} : vector<3x16xf32> to vector<1x16xf32>
    %17 = arith.mulf %15, %16 : vector<1x16xf32>
    %18 = vector.extract_strided_slice %9 {offsets = [2, 0], sizes = [1, 16], strides = [1, 1]} : vector<3x16xf32> to vector<1x16xf32>
    %19 = arith.mulf %17, %18 : vector<1x16xf32>
    %cst = arith.constant 1.000000e+00 : f32
    %20 = vector.broadcast %cst : f32 to vector<8x16xf32>
    %21 = vector.extract_strided_slice %5 {offsets = [0, 0], sizes = [8, 1], strides = [1, 1]} : vector<8x3xf32> to vector<8x1xf32>
    %22 = vector.extract_strided_slice %7 {offsets = [0, 0], sizes = [8, 1], strides = [1, 1]} : vector<8x3xf32> to vector<8x1xf32>
    %23 = vector.extract_strided_slice %1 {offsets = [0, 0], sizes = [1, 16], strides = [1, 1]} : vector<3x16xf32> to vector<1x16xf32>
    %24 = vector.extract_strided_slice %3 {offsets = [0, 0], sizes = [1, 16], strides = [1, 1]} : vector<3x16xf32> to vector<1x16xf32>
    %25 = vector.broadcast %22 : vector<8x1xf32> to vector<8x16xf32>
    %26 = vector.broadcast %24 : vector<1x16xf32> to vector<8x16xf32>
    %27 = arith.minimumf %25, %26 : vector<8x16xf32>
    %28 = vector.broadcast %21 : vector<8x1xf32> to vector<8x16xf32>
    %29 = vector.broadcast %23 : vector<1x16xf32> to vector<8x16xf32>
    %30 = arith.maximumf %28, %29 : vector<8x16xf32>
    %31 = arith.subf %27, %30 : vector<8x16xf32>
    %cst_11 = arith.constant 0.000000e+00 : f32
    %32 = vector.broadcast %cst_11 : f32 to vector<8x16xf32>
    %33 = arith.maximumf %31, %32 : vector<8x16xf32>
    %34 = arith.mulf %20, %33 : vector<8x16xf32>
    %35 = vector.extract_strided_slice %5 {offsets = [0, 1], sizes = [8, 1], strides = [1, 1]} : vector<8x3xf32> to vector<8x1xf32>
    %36 = vector.extract_strided_slice %7 {offsets = [0, 1], sizes = [8, 1], strides = [1, 1]} : vector<8x3xf32> to vector<8x1xf32>
    %37 = vector.extract_strided_slice %1 {offsets = [1, 0], sizes = [1, 16], strides = [1, 1]} : vector<3x16xf32> to vector<1x16xf32>
    %38 = vector.extract_strided_slice %3 {offsets = [1, 0], sizes = [1, 16], strides = [1, 1]} : vector<3x16xf32> to vector<1x16xf32>
    %39 = vector.broadcast %36 : vector<8x1xf32> to vector<8x16xf32>
    %40 = vector.broadcast %38 : vector<1x16xf32> to vector<8x16xf32>
    %41 = arith.minimumf %39, %40 : vector<8x16xf32>
    %42 = vector.broadcast %35 : vector<8x1xf32> to vector<8x16xf32>
    %43 = vector.broadcast %37 : vector<1x16xf32> to vector<8x16xf32>
    %44 = arith.maximumf %42, %43 : vector<8x16xf32>
    %45 = arith.subf %41, %44 : vector<8x16xf32>
    %cst_12 = arith.constant 0.000000e+00 : f32
    %46 = vector.broadcast %cst_12 : f32 to vector<8x16xf32>
    %47 = arith.maximumf %45, %46 : vector<8x16xf32>
    %48 = arith.mulf %34, %47 : vector<8x16xf32>
    %49 = vector.extract_strided_slice %5 {offsets = [0, 2], sizes = [8, 1], strides = [1, 1]} : vector<8x3xf32> to vector<8x1xf32>
    %50 = vector.extract_strided_slice %7 {offsets = [0, 2], sizes = [8, 1], strides = [1, 1]} : vector<8x3xf32> to vector<8x1xf32>
    %51 = vector.extract_strided_slice %1 {offsets = [2, 0], sizes = [1, 16], strides = [1, 1]} : vector<3x16xf32> to vector<1x16xf32>
    %52 = vector.extract_strided_slice %3 {offsets = [2, 0], sizes = [1, 16], strides = [1, 1]} : vector<3x16xf32> to vector<1x16xf32>
    %53 = vector.broadcast %50 : vector<8x1xf32> to vector<8x16xf32>
    %54 = vector.broadcast %52 : vector<1x16xf32> to vector<8x16xf32>
    %55 = arith.minimumf %53, %54 : vector<8x16xf32>
    %56 = vector.broadcast %49 : vector<8x1xf32> to vector<8x16xf32>
    %57 = vector.broadcast %51 : vector<1x16xf32> to vector<8x16xf32>
    %58 = arith.maximumf %56, %57 : vector<8x16xf32>
    %59 = arith.subf %55, %58 : vector<8x16xf32>
    %cst_13 = arith.constant 0.000000e+00 : f32
    %60 = vector.broadcast %cst_13 : f32 to vector<8x16xf32>
    %61 = arith.maximumf %59, %60 : vector<8x16xf32>
    %62 = arith.mulf %48, %61 : vector<8x16xf32>
    %63 = vector.broadcast %14 : vector<8x1xf32> to vector<8x16xf32>
    %64 = vector.broadcast %19 : vector<1x16xf32> to vector<8x16xf32>
    %65 = arith.addf %63, %64 : vector<8x16xf32>
    %66 = arith.subf %65, %62 : vector<8x16xf32>
    %cst_14 = arith.constant 9.99999993E-9 : f32
    %67 = vector.broadcast %cst_14 : f32 to vector<8x16xf32>
    %68 = arith.maximumf %66, %67 : vector<8x16xf32>
    %69 = arith.divf %62, %68 : vector<8x16xf32>
    %c0_15 = arith.constant 0 : index
    %c0_16 = arith.constant 0 : index
    %c0_17 = arith.constant 0 : index
    %70 = vector.load %arg6[%c0_15, %c0_16, %c0_17] : memref<1x1x16xf32, #tpu.memory_space<vmem>>, vector<1x1x16xf32>
    %71 = vector.shape_cast %70 : vector<1x1x16xf32> to vector<1x16xf32>
    %72 = vector.broadcast %71 : vector<1x16xf32> to vector<8x16xf32>
    %73 = arith.mulf %69, %72 : vector<8x16xf32>
    %cst_18 = arith.constant dense<0xFF800000> : vector<8xf32>
    %74 = vector.multi_reduction <maximumf>, %73, %cst_18 [1] : vector<8x16xf32> to vector<8xf32>
    %75 = vector.shape_cast %74 : vector<8xf32> to vector<8x1xf32>
    %76 = tpu.iota {dimensions = array<i32: 1>} : vector<8x16xi32>
    %77 = vector.broadcast %75 : vector<8x1xf32> to vector<8x16xf32>
    %78 = arith.cmpf oeq, %73, %77 : vector<8x16xf32>
    %c16_i32 = arith.constant 16 : i32
    %79 = vector.broadcast %c16_i32 : i32 to vector<8x16xi32>
    %80 = arith.select %78, %76, %79 : vector<8x16xi1>, vector<8x16xi32>
    %cst_19 = arith.constant dense<2147483647> : vector<8xi32>
    %81 = vector.multi_reduction <minsi>, %80, %cst_19 [1] : vector<8x16xi32> to vector<8xi32>
    %82 = vector.shape_cast %81 : vector<8xi32> to vector<8x1xi32>
    %83 = vector.broadcast %82 : vector<8x1xi32> to vector<8x16xi32>
    %84 = arith.cmpi eq, %76, %83 : vector<8x16xi32>
    %85 = arith.extui %84 : vector<8x16xi1> to vector<8x16xi32>
    %86 = arith.sitofp %85 : vector<8x16xi32> to vector<8x16xf32>
    %87 = arith.truncf %86 : vector<8x16xf32> to vector<8x16xbf16>
    %c0_20 = arith.constant 0 : index
    %c0_21 = arith.constant 0 : index
    %c0_22 = arith.constant 0 : index
    %88 = vector.load %arg1[%c0_20, %c0_21, %c0_22] : memref<1x16x32xbf16, #tpu.memory_space<vmem>>, vector<1x16x32xbf16>
    %89 = vector.shape_cast %88 : vector<1x16x32xbf16> to vector<16x32xbf16>
    %cst_23 = arith.constant dense<0.000000e+00> : vector<8x32xf32>
    %90 = tpu.matmul %87, %89, %cst_23 {dimension_numbers = #tpu.dot_dimension_numbers<[1], [0], [0], [1], [0, 0, 1, 1], [], []>} : vector<8x16xbf16>, vector<16x32xbf16>, vector<8x32xf32> -> vector<8x32xf32>
    %91 = arith.truncf %90 : vector<8x32xf32> to vector<8x32xbf16>
    %c0_24 = arith.constant 0 : index
    %c0_25 = arith.constant 0 : index
    %92 = vector.load %arg7[%c0_24, %c0_25] : memref<32x32xbf16, #tpu.memory_space<vmem>>, vector<32x32xbf16>
    %cst_26 = arith.constant dense<0.000000e+00> : vector<8x32xf32>
    %93 = tpu.matmul %91, %92, %cst_26 {dimension_numbers = #tpu.dot_dimension_numbers<[1], [0], [0], [1], [0, 0, 1, 1], [], []>} : vector<8x32xbf16>, vector<32x32xbf16>, vector<8x32xf32> -> vector<8x32xf32>
    %c0_27 = arith.constant 0 : index
    %c0_28 = arith.constant 0 : index
    %94 = vector.load %arg8[%c0_27, %c0_28] : memref<1x32xf32, #tpu.memory_space<vmem>>, vector<1x32xf32>
    %95 = vector.broadcast %94 : vector<1x32xf32> to vector<8x32xf32>
    %96 = arith.addf %93, %95 : vector<8x32xf32>
    %cst_29 = arith.constant 0.000000e+00 : f32
    %97 = vector.broadcast %cst_29 : f32 to vector<8x32xf32>
    %98 = arith.maximumf %96, %97 : vector<8x32xf32>
    %99 = arith.truncf %98 : vector<8x32xf32> to vector<8x32xbf16>
    %c0_30 = arith.constant 0 : index
    %c0_31 = arith.constant 0 : index
    %c0_32 = arith.constant 0 : index
    %100 = vector.load %arg9[%c0_30, %c0_31, %c0_32] : memref<1x8x32xbf16, #tpu.memory_space<vmem>>, vector<1x8x32xbf16>
    %101 = vector.shape_cast %100 : vector<1x8x32xbf16> to vector<8x32xbf16>
    %102 = vector.shape_cast %99 : vector<8x32xbf16> to vector<1x8x32xbf16>
    tpu.vector_store %arg9[%c0_30, %c0_31, %c0_32], %102 {strides = array<i32>} : memref<1x8x32xbf16, #tpu.memory_space<vmem>>, vector<1x8x32xbf16>,
    return
  }
  func.func @transform_0(%arg0: i32) -> (i32, i32, i32) {
    %c0_i32 = arith.constant 0 : i32
    %c0_i32_0 = arith.constant 0 : i32
    %c0_i32_1 = arith.constant 0 : i32
    return %arg0, %c0_i32, %c0_i32_0 : i32, i32, i32
  }
  func.func @transform_1(%arg0: i32) -> (i32, i32, i32) {
    %c0_i32 = arith.constant 0 : i32
    %c0_i32_0 = arith.constant 0 : i32
    %c0_i32_1 = arith.constant 0 : i32
    return %arg0, %c0_i32, %c0_i32_0 : i32, i32, i32
  }
  func.func @transform_2(%arg0: i32) -> (i32, i32, i32) {
    %c0_i32 = arith.constant 0 : i32
    %c0_i32_0 = arith.constant 0 : i32
    %c0_i32_1 = arith.constant 0 : i32
    return %arg0, %c0_i32, %c0_i32_0 : i32, i32, i32
  }
  func.func @transform_3(%arg0: i32) -> (i32, i32, i32) {
    %c0_i32 = arith.constant 0 : i32
    %c0_i32_0 = arith.constant 0 : i32
    %c0_i32_1 = arith.constant 0 : i32
    return %arg0, %c0_i32, %c0_i32_0 : i32, i32, i32
  }
  func.func @transform_4(%arg0: i32) -> (i32, i32, i32) {
    %c0_i32 = arith.constant 0 : i32
    %c0_i32_0 = arith.constant 0 : i32
    %c0_i32_1 = arith.constant 0 : i32
    return %arg0, %c0_i32, %c0_i32_0 : i32, i32, i32
  }
  func.func @transform_5(%arg0: i32) -> (i32, i32, i32) {
    %c0_i32 = arith.constant 0 : i32
    %c0_i32_0 = arith.constant 0 : i32
    %c0_i32_1 = arith.constant 0 : i32
    return %arg0, %c0_i32, %c0_i32_0 : i32, i32, i32
  }
  func.func @transform_6(%arg0: i32) -> (i32, i32) {
    %c0_i32 = arith.constant 0 : i32
    %c0_i32_0 = arith.constant 0 : i32
    %c0_i32_1 = arith.constant 0 : i32
    return %c0_i32, %c0_i32_0 : i32, i32
  }
  func.func @transform_7(%arg0: i32) -> (i32, i32) {
    %c0_i32 = arith.constant 0 : i32
    %c0_i32_0 = arith.constant 0 : i32
    %c0_i32_1 = arith.constant 0 : i32
    return %c0_i32, %c0_i32_0 : i32, i32
  }
  func.func @transform_8(%arg0: i32) -> (i32, i32, i32) {
    %c0_i32 = arith.constant 0 : i32
    %c0_i32_0 = arith.constant 0 : i32
    %c0_i32_1 = arith.constant 0 : i32
    return %arg0, %c0_i32, %c0_i32_0 : i32, i32, i32
  }
}

</mosaic_0001>

<llo_original>
// kernel: tpu_custom_call.1
$region0: #{tpu_custom_call.1}
  #allocation0 [shape = 'u32[]', space=smem, size = 0x4, offset = 0x4, fixed_abs, tag = 'smem constant byte address 0x4 - core index']
  #allocation1 [shape = 'u32[144,128]{1,0:T(1,128)}', space=vmem, size = 0x12000, scoped, tag = 'internal scratch']
  %s0 = inlined_call_operand.vmem [shape: bf16[2,16,32], index: 0, kind: input, shape index: {}]
  %s1 = inlined_call_operand.vmem [shape: f32[2,3,16], index: 1, kind: input, shape index: {}]
  %s2 = inlined_call_operand.vmem [shape: f32[2,3,16], index: 2, kind: input, shape index: {}]
  %s3 = inlined_call_operand.vmem [shape: f32[2,8,3], index: 3, kind: input, shape index: {}]
  %s4 = inlined_call_operand.vmem [shape: f32[2,8,3], index: 4, kind: input, shape index: {}]
  %s5 = inlined_call_operand.vmem [shape: f32[2,1,16], index: 5, kind: input, shape index: {}]
  %s6 = inlined_call_operand.vmem [shape: bf16[32,32], index: 6, kind: input, shape index: {}]
  %s7 = inlined_call_operand.vmem [shape: f32[1,32], index: 7, kind: input, shape index: {}]
  %s8 = inlined_call_operand.hbm [shape: bf16[2,8,32], index: 8, kind: output, shape index: {}]
  %s9 = sld [smem:[#allocation0]]
  $region65: #{tpu_custom_call.1} parent=0
    _
  %s11 = ssub.s32 1, %s9
  %s12 = scalar_select 0, %s11, %s9
  $region1: #{tpu_custom_call.1} parent=0
    #allocation2 [shape = 'u8[4096]{0}', space=vmem, size = 0x1000, scoped, tag = 'output window, operand 0']
    #allocation3 [shape = 's32[2]{0}', space=sflag, size = 0x8, scoped, tag = 'scoped memory for tpu_custom_call.1']
    %13 = vsyncpa [#allocation3], 0
    %s14 = scalar_lea.sflag [#allocation3], 1
    %15 = vsyncpa %s14, 0
    loop: start=0, step=1, limit=4
    $region2: #{tpu_custom_call.1} parent=1 // loop_pre_header
      _
    $region3: #{tpu_custom_call.1} parent=1 // loop_header
      %s17 = sphi 0, %s21
      %p18 = scmp.ge.s32.totalorder %s17, 4
      %s27 = sphi 0, %s29
      %s30 = sphi 0, %s27
      %s31 = sphi 0, %s30
      %s47 = sphi 0, %s31
      %s53 = sphi 0, %s55
      %s56 = sphi 0, %s53
      %s57 = sphi 0, %s56
      %s73 = sphi 0, %s57
      %s79 = sphi 0, %s81
      %s82 = sphi 0, %s79
      %s83 = sphi 0, %s82
      %s99 = sphi 0, %s83
      %s105 = sphi 0, %s107
      %s108 = sphi 0, %s105
      %s109 = sphi 0, %s108
      %s125 = sphi 0, %s109
      %s131 = sphi 0, %s133
      %s134 = sphi 0, %s131
      %s135 = sphi 0, %s134
      %s151 = sphi 0, %s135
      %s157 = sphi 0, %s159
      %s160 = sphi 0, %s157
      %s161 = sphi 0, %s160
      %s177 = sphi 0, %s161
      %s181 = sphi 0, %s181
      %s183 = sphi 0, %s181
      %s184 = sphi 0, %s183
      %s198 = sphi 0, %s184
      %s202 = sphi 0, %s202
      %s204 = sphi 0, %s202
      %s205 = sphi 0, %s204
      %s219 = sphi 0, %s205
      %s225 = sphi 0, %s227
      %s228 = sphi 0, %s225
      %s229 = sphi 0, %s228
      %s245 = sphi 0, %s229
    $region4: #{tpu_custom_call.1} parent=1 // loop_header_branch
      %20 = sbr.rel (%p18) target = $region8
    $region5: #{tpu_custom_call.1} parent=1 // loop_body
      %s22 = ssub.s32 %s17, 1
      %s23 = ssub.s32 %s17, 2
      %s24 = sadd.s32 %s17, 1
      %s25 = ssub.s32 %s17, %s24
      %p26 = scmp.eq.s32.totalorder %s25, 0
      %s28 = sadd.s32 %s27, 1
      %s29 = scalar_select %p26, %s27, %s28
      %p32 = pneg %p26
      %p33 = scmp.eq.s32.totalorder %s17, 1
      %p34 = por %p32, %p33
      %p35 = scmp.ne.s32.totalorder %s27, %s30
      %p36 = scmp.eq.s32.totalorder %s17, 0
      %p37 = por %p35, %p36
      %p38 = scmp.ne.s32.totalorder %s27, %s30
      %p39 = scmp.eq.s32.totalorder %s22, 1
      %p40 = por %p38, %p39
      %p41 = scmp.ne.s32.totalorder %s30, %s31
      %p42 = scmp.eq.s32.totalorder %s22, 0
      %p43 = por %p41, %p42
      %p44 = scmp.ne.s32.totalorder %s30, %s31
      %p45 = scmp.eq.s32.totalorder %s23, 1
      %p46 = por %p44, %p45
      %p48 = scmp.ne.s32.totalorder %s31, %s47
      %p49 = scmp.eq.s32.totalorder %s23, 0
      %p50 = por %p48, %p49
      %s51 = ssub.s32 %s17, %s24
      %p52 = scmp.eq.s32.totalorder %s51, 0
      %s54 = sadd.s32 %s53, 1
      %s55 = scalar_select %p52, %s53, %s54
      %p58 = pneg %p52
      %p59 = scmp.eq.s32.totalorder %s17, 1
      %p60 = por %p58, %p59
      %p61 = scmp.ne.s32.totalorder %s53, %s56
      %p62 = scmp.eq.s32.totalorder %s17, 0
      %p63 = por %p61, %p62
      %p64 = scmp.ne.s32.totalorder %s53, %s56
      %p65 = scmp.eq.s32.totalorder %s22, 1
      %p66 = por %p64, %p65
      %p67 = scmp.ne.s32.totalorder %s56, %s57
      %p68 = scmp.eq.s32.totalorder %s22, 0
      %p69 = por %p67, %p68
      %p70 = scmp.ne.s32.totalorder %s56, %s57
      %p71 = scmp.eq.s32.totalorder %s23, 1
      %p72 = por %p70, %p71
      %p74 = scmp.ne.s32.totalorder %s57, %s73
      %p75 = scmp.eq.s32.totalorder %s23, 0
      %p76 = por %p74, %p75
      %s77 = ssub.s32 %s17, %s24
      %p78 = scmp.eq.s32.totalorder %s77, 0
      %s80 = sadd.s32 %s79, 1
      %s81 = scalar_select %p78, %s79, %s80
      %p84 = pneg %p78
      %p85 = scmp.eq.s32.totalorder %s17, 1
      %p86 = por %p84, %p85
      %p87 = scmp.ne.s32.totalorder %s79, %s82
      %p88 = scmp.eq.s32.totalorder %s17, 0
      %p89 = por %p87, %p88
      %p90 = scmp.ne.s32.totalorder %s79, %s82
      %p91 = scmp.eq.s32.totalorder %s22, 1
      %p92 = por %p90, %p91
      %p93 = scmp.ne.s32.totalorder %s82, %s83
      %p94 = scmp.eq.s32.totalorder %s22, 0
      %p95 = por %p93, %p94
      %p96 = scmp.ne.s32.totalorder %s82, %s83
      %p97 = scmp.eq.s32.totalorder %s23, 1
      %p98 = por %p96, %p97
      %p100 = scmp.ne.s32.totalorder %s83, %s99
      %p101 = scmp.eq.s32.totalorder %s23, 0
      %p102 = por %p100, %p101
      %s103 = ssub.s32 %s17, %s24
      %p104 = scmp.eq.s32.totalorder %s103, 0
      %s106 = sadd.s32 %s105, 1
      %s107 = scalar_select %p104, %s105, %s106
      %p110 = pneg %p104
      %p111 = scmp.eq.s32.totalorder %s17, 1
      %p112 = por %p110, %p111
      %p113 = scmp.ne.s32.totalorder %s105, %s108
      %p114 = scmp.eq.s32.totalorder %s17, 0
      %p115 = por %p113, %p114
      %p116 = scmp.ne.s32.totalorder %s105, %s108
      %p117 = scmp.eq.s32.totalorder %s22, 1
      %p118 = por %p116, %p117
      %p119 = scmp.ne.s32.totalorder %s108, %s109
      %p120 = scmp.eq.s32.totalorder %s22, 0
      %p121 = por %p119, %p120
      %p122 = scmp.ne.s32.totalorder %s108, %s109
      %p123 = scmp.eq.s32.totalorder %s23, 1
      %p124 = por %p122, %p123
      %p126 = scmp.ne.s32.totalorder %s109, %s125
      %p127 = scmp.eq.s32.totalorder %s23, 0
      %p128 = por %p126, %p127
      %s129 = ssub.s32 %s17, %s24
      %p130 = scmp.eq.s32.totalorder %s129, 0
      %s132 = sadd.s32 %s131, 1
      %s133 = scalar_select %p130, %s131, %s132
      %p136 = pneg %p130
      %p137 = scmp.eq.s32.totalorder %s17, 1
      %p138 = por %p136, %p137
      %p139 = scmp.ne.s32.totalorder %s131, %s134
      %p140 = scmp.eq.s32.totalorder %s17, 0
      %p141 = por %p139, %p140
      %p142 = scmp.ne.s32.totalorder %s131, %s134
      %p143 = scmp.eq.s32.totalorder %s22, 1
      %p144 = por %p142, %p143
      %p145 = scmp.ne.s32.totalorder %s134, %s135
      %p146 = scmp.eq.s32.totalorder %s22, 0
      %p147 = por %p145, %p146
      %p148 = scmp.ne.s32.totalorder %s134, %s135
      %p149 = scmp.eq.s32.totalorder %s23, 1
      %p150 = por %p148, %p149
      %p152 = scmp.ne.s32.totalorder %s135, %s151
      %p153 = scmp.eq.s32.totalorder %s23, 0
      %p154 = por %p152, %p153
      %s155 = ssub.s32 %s17, %s24
      %p156 = scmp.eq.s32.totalorder %s155, 0
      %s158 = sadd.s32 %s157, 1
      %s159 = scalar_select %p156, %s157, %s158
      %p162 = pneg %p156
      %p163 = scmp.eq.s32.totalorder %s17, 1
      %p164 = por %p162, %p163
      %p165 = scmp.ne.s32.totalorder %s157, %s160
      %p166 = scmp.eq.s32.totalorder %s17, 0
      %p167 = por %p165, %p166
      %p168 = scmp.ne.s32.totalorder %s157, %s160
      %p169 = scmp.eq.s32.totalorder %s22, 1
      %p170 = por %p168, %p169
      %p171 = scmp.ne.s32.totalorder %s160, %s161
      %p172 = scmp.eq.s32.totalorder %s22, 0
      %p173 = por %p171, %p172
      %p174 = scmp.ne.s32.totalorder %s160, %s161
      %p175 = scmp.eq.s32.totalorder %s23, 1
      %p176 = por %p174, %p175
      %p178 = scmp.ne.s32.totalorder %s161, %s177
      %p179 = scmp.eq.s32.totalorder %s23, 0
      %p180 = por %p178, %p179
      %s182 = sadd.s32 %s181, 1
      %p185 = scmp.eq.s32.totalorder %s17, 1
      %p186 = scmp.ne.s32.totalorder %s181, %s183
      %p187 = scmp.eq.s32.totalorder %s17, 0
      %p188 = por %p186, %p187
      %p189 = scmp.ne.s32.totalorder %s181, %s183
      %p190 = scmp.eq.s32.totalorder %s22, 1
      %p191 = por %p189, %p190
      %p192 = scmp.ne.s32.totalorder %s183, %s184
      %p193 = scmp.eq.s32.totalorder %s22, 0
      %p194 = por %p192, %p193
      %p195 = scmp.ne.s32.totalorder %s183, %s184
      %p196 = scmp.eq.s32.totalorder %s23, 1
      %p197 = por %p195, %p196
      %p199 = scmp.ne.s32.totalorder %s184, %s198
      %p200 = scmp.eq.s32.totalorder %s23, 0
      %p201 = por %p199, %p200
      %s203 = sadd.s32 %s202, 1
      %p206 = scmp.eq.s32.totalorder %s17, 1
      %p207 = scmp.ne.s32.totalorder %s202, %s204
      %p208 = scmp.eq.s32.totalorder %s17, 0
      %p209 = por %p207, %p208
      %p210 = scmp.ne.s32.totalorder %s202, %s204
      %p211 = scmp.eq.s32.totalorder %s22, 1
      %p212 = por %p210, %p211
      %p213 = scmp.ne.s32.totalorder %s204, %s205
      %p214 = scmp.eq.s32.totalorder %s22, 0
      %p215 = por %p213, %p214
      %p216 = scmp.ne.s32.totalorder %s204, %s205
      %p217 = scmp.eq.s32.totalorder %s23, 1
      %p218 = por %p216, %p217
      %p220 = scmp.ne.s32.totalorder %s205, %s219
      %p221 = scmp.eq.s32.totalorder %s23, 0
      %p222 = por %p220, %p221
      %s223 = ssub.s32 %s17, %s24
      %p224 = scmp.eq.s32.totalorder %s223, 0
      %s226 = sadd.s32 %s225, 1
      %s227 = scalar_select %p224, %s225, %s226
      %p230 = pneg %p224
      %p231 = scmp.eq.s32.totalorder %s17, 1
      %p232 = por %p230, %p231
      %p233 = scmp.ne.s32.totalorder %s225, %s228
      %p234 = scmp.eq.s32.totalorder %s17, 0
      %p235 = por %p233, %p234
      %p236 = scmp.ne.s32.totalorder %s225, %s228
      %p237 = scmp.eq.s32.totalorder %s22, 1
      %p238 = por %p236, %p237
      %p239 = scmp.ne.s32.totalorder %s228, %s229
      %p240 = scmp.eq.s32.totalorder %s22, 0
      %p241 = por %p239, %p240
      %p242 = scmp.ne.s32.totalorder %s228, %s229
      %p243 = scmp.eq.s32.totalorder %s23, 1
      %p244 = por %p242, %p243
      %p246 = scmp.ne.s32.totalorder %s229, %s245
      %p247 = scmp.eq.s32.totalorder %s23, 0
      %p248 = por %p246, %p247
      %p249 = scmp.le.s32.totalorder 1, %s17
      %p250 = scmp.lt.s32.totalorder %s17, 3
      %p251 = pnand %p249, %p250
      %p252 = pneg %p251
      // Predicated region
      $region9: #{tpu_custom_call.1} parent=5 // pred_check
        _
      $region10: #{tpu_custom_call.1} parent=5 // pred_check_branch
        %254 = sbr.rel (%p251) target = $region12
      $region11: #{tpu_custom_call.1} parent=5 // pred_region
        %s255 = ssub.s32 %s17, 1
        // Predicated region
        $region13: #{tpu_custom_call.1} parent=11 // pred_check
          %p256 = pneg %p194
        $region14: #{tpu_custom_call.1} parent=11 // pred_check_branch
          %258 = sbr.rel (%p256) target = $region16
        $region15: #{tpu_custom_call.1} parent=11 // pred_region
          _
        $region16: #{tpu_custom_call.1} parent=11 // pred_fallthru
          _
        // Predicated region
        $region17: #{tpu_custom_call.1} parent=11 // pred_check
          %p259 = pneg %p215
        $region18: #{tpu_custom_call.1} parent=11 // pred_check_branch
          %261 = sbr.rel (%p259) target = $region20
        $region19: #{tpu_custom_call.1} parent=11 // pred_region
          _
        $region20: #{tpu_custom_call.1} parent=11 // pred_fallthru
          _
      $region12: #{tpu_custom_call.1} parent=5 // pred_fallthru
        _
      %p262 = scmp.lt.s32.totalorder %s17, 2
      // Predicated region
      $region21: #{tpu_custom_call.1} parent=5 // pred_check
        %p263 = pneg %p262
      $region22: #{tpu_custom_call.1} parent=5 // pred_check_branch
        %265 = sbr.rel (%p263) target = $region24
      $region23: #{tpu_custom_call.1} parent=5 // pred_region
        // Predicated region
        $region25: #{tpu_custom_call.1} parent=23 // pred_check
          %p266 = pneg %p37
        $region26: #{tpu_custom_call.1} parent=23 // pred_check_branch
          %268 = sbr.rel (%p266) target = $region28
        $region27: #{tpu_custom_call.1} parent=23 // pred_region
          %p269 = scmp.lt.s32.totalorder %s17, 1
          %s270 = scalar_select %p269, %s17, 1
          %s271 = smul.addr %s270, 2
          %s272 = smul.addr %s271, 4
          %s273 = scalar_lea.vmem %s0, %s272
        $region28: #{tpu_custom_call.1} parent=23 // pred_fallthru
          _
        // Predicated region
        $region29: #{tpu_custom_call.1} parent=23 // pred_check
          %p274 = pneg %p63
        $region30: #{tpu_custom_call.1} parent=23 // pred_check_branch
          %276 = sbr.rel (%p274) target = $region32
        $region31: #{tpu_custom_call.1} parent=23 // pred_region
          %p277 = scmp.lt.s32.totalorder %s17, 1
          %s278 = scalar_select %p277, %s17, 1
          %s279 = smul.addr %s278, 4
          %s280 = scalar_lea.vmem %s1, %s279
        $region32: #{tpu_custom_call.1} parent=23 // pred_fallthru
          _
        // Predicated region
        $region33: #{tpu_custom_call.1} parent=23 // pred_check
          %p281 = pneg %p89
        $region34: #{tpu_custom_call.1} parent=23 // pred_check_branch
          %283 = sbr.rel (%p281) target = $region36
        $region35: #{tpu_custom_call.1} parent=23 // pred_region
          %p284 = scmp.lt.s32.totalorder %s17, 1
          %s285 = scalar_select %p284, %s17, 1
          %s286 = smul.addr %s285, 4
          %s287 = scalar_lea.vmem %s2, %s286
        $region36: #{tpu_custom_call.1} parent=23 // pred_fallthru
          _
        // Predicated region
        $region37: #{tpu_custom_call.1} parent=23 // pred_check
          %p288 = pneg %p115
        $region38: #{tpu_custom_call.1} parent=23 // pred_check_branch
          %290 = sbr.rel (%p288) target = $region40
        $region39: #{tpu_custom_call.1} parent=23 // pred_region
          %p291 = scmp.lt.s32.totalorder %s17, 1
          %s292 = scalar_select %p291, %s17, 1
          %s293 = smul.addr %s292, 8
          %s294 = scalar_lea.vmem %s3, %s293
        $region40: #{tpu_custom_call.1} parent=23 // pred_fallthru
          _
        // Predicated region
        $region41: #{tpu_custom_call.1} parent=23 // pred_check
          %p295 = pneg %p141
        $region42: #{tpu_custom_call.1} parent=23 // pred_check_branch
          %297 = sbr.rel (%p295) target = $region44
        $region43: #{tpu_custom_call.1} parent=23 // pred_region
          %p298 = scmp.lt.s32.totalorder %s17, 1
          %s299 = scalar_select %p298, %s17, 1
          %s300 = smul.addr %s299, 8
          %s301 = scalar_lea.vmem %s4, %s300
        $region44: #{tpu_custom_call.1} parent=23 // pred_fallthru
          _
        // Predicated region
        $region45: #{tpu_custom_call.1} parent=23 // pred_check
          %p302 = pneg %p167
        $region46: #{tpu_custom_call.1} parent=23 // pred_check_branch
          %304 = sbr.rel (%p302) target = $region48
        $region47: #{tpu_custom_call.1} parent=23 // pred_region
          %p305 = scmp.lt.s32.totalorder %s17, 1
          %s306 = scalar_select %p305, %s17, 1
          %s307 = scalar_lea.vmem %s5, %s306
        $region48: #{tpu_custom_call.1} parent=23 // pred_fallthru
          _
      $region24: #{tpu_custom_call.1} parent=5 // pred_fallthru
        _
      %p308 = scmp.le.s32.totalorder 1, %s17
      %p309 = scmp.lt.s32.totalorder %s17, 3
      %p310 = pnand %p308, %p309
      %p311 = pneg %p310
      // Predicated region
      $region49: #{tpu_custom_call.1} parent=5 // pred_check
        _
      $region50: #{tpu_custom_call.1} parent=5 // pred_check_branch
        %313 = sbr.rel (%p310) target = $region52
      $region51: #{tpu_custom_call.1} parent=5 // pred_region
        %s314 = ssub.s32 %s17, 1
        %p315 = scmp.lt.s32.totalorder %s22, 1
        %s316 = scalar_select %p315, %s22, 1
        %s317 = smul.addr %s316, 2
        %s318 = smul.addr %s317, 4
        %s319 = scalar_lea.vmem %s0, %s318
        %p320 = pneg %p43
        %p321 = pneg %p40
        %p322 = scmp.lt.s32.totalorder %s22, 1
        %s323 = scalar_select %p322, %s22, 1
        %s324 = smul.addr %s323, 4
        %s325 = scalar_lea.vmem %s1, %s324
        %p326 = pneg %p69
        %p327 = pneg %p66
        %p328 = scmp.lt.s32.totalorder %s22, 1
        %s329 = scalar_select %p328, %s22, 1
        %s330 = smul.addr %s329, 4
        %s331 = scalar_lea.vmem %s2, %s330
        %p332 = pneg %p95
        %p333 = pneg %p92
        %p334 = scmp.lt.s32.totalorder %s22, 1
        %s335 = scalar_select %p334, %s22, 1
        %s336 = smul.addr %s335, 8
        %s337 = scalar_lea.vmem %s3, %s336
        %p338 = pneg %p121
        %p339 = pneg %p118
        %p340 = scmp.lt.s32.totalorder %s22, 1
        %s341 = scalar_select %p340, %s22, 1
        %s342 = smul.addr %s341, 8
        %s343 = scalar_lea.vmem %s4, %s342
        %p344 = pneg %p147
        %p345 = pneg %p144
        %p346 = scmp.lt.s32.totalorder %s22, 1
        %s347 = scalar_select %p346, %s22, 1
        %s348 = scalar_lea.vmem %s5, %s347
        %p349 = pneg %p173
        %p350 = pneg %p170
        %p351 = pneg %p194
        %p352 = pneg %p191
        %p353 = pneg %p215
        %p354 = pneg %p212
        %p355 = pneg %p241
        %p356 = pneg %p238
        %s357 = sand.u32 %s228, 1
        %s358 = scalar_lea.sflag [#allocation3], %s357
        %s359 = sand.u32 %s228, 1
        %s360 = smul.addr %s359, 4
        %s361 = scalar_lea.vmem [#allocation2], %s360
        %p362 = scmp.lt.s32.totalorder %s22, 1
        %s363 = scalar_select %p362, %s22, 1
        %s364 = smul.addr %s363, 2
        %s365 = smul.addr %s364, 4
        %s366 = scalar_lea.vmem %s0, %s365
        %p367 = scmp.lt.s32.totalorder %s22, 1
        %s368 = scalar_select %p367, %s22, 1
        %s369 = smul.addr %s368, 4
        %s370 = scalar_lea.vmem %s1, %s369
        %p371 = scmp.lt.s32.totalorder %s22, 1
        %s372 = scalar_select %p371, %s22, 1
        %s373 = smul.addr %s372, 4
        %s374 = scalar_lea.vmem %s2, %s373
        %p375 = scmp.lt.s32.totalorder %s22, 1
        %s376 = scalar_select %p375, %s22, 1
        %s377 = smul.addr %s376, 8
        %s378 = scalar_lea.vmem %s3, %s377
        %p379 = scmp.lt.s32.totalorder %s22, 1
        %s380 = scalar_select %p379, %s22, 1
        %s381 = smul.addr %s380, 8
        %s382 = scalar_lea.vmem %s4, %s381
        %p383 = scmp.lt.s32.totalorder %s22, 1
        %s384 = scalar_select %p383, %s22, 1
        %s385 = scalar_lea.vmem %s5, %s384
        %v387 = vld [vmem:[%s370] sm:$0x7]
        %v388 = vld [vmem:[%s374] sm:$0x7]
        %v389 = vld [vmem:[%s378] sm:$0xff]
        %v390 = vld [vmem:[%s382] sm:$0xff]
        %v391 = vsub.f32 %v390, %v389
        %v392 = vsub.f32 %v388, %v387
        %394 = vrot.lane.b32.xlu0 %v391, 127
        %v395 = vpop.permute.xlu0 %394
        %v397 = vmul.f32 %v391, %v395
        %398 = vrot.lane.b32.xlu0 %v391, 126
        %v399 = vpop.permute.xlu0 %398
        %v401 = vmul.f32 %v397, %v399
        %v403 = vrot.slane %v392, 1
        %v405 = vmul.f32 %v392, %v403
        %v406 = vrot.slane %v392, 2
        %v408 = vmul.f32 %v405, %v406
        %410 = vset.pattern.permute.xlu0 0
        %411 = vperm.xlu0 %410, %v390
        %v412 = vpop.permute.xlu0 %411
        %v414 = vlaneseq
        %v415 = vshrl.u32 %v414, 7
        %v416 = vsub.s32 0, %v415
        %v417 = vrot.slane %v388, %v416
        %v418 = vmin.f32 %v412, %v417
        %420 = vset.pattern.permute.xlu0 0
        %421 = vperm.xlu0 %420, %v389
        %v422 = vpop.permute.xlu0 %421
        %v424 = vlaneseq
        %v425 = vshrl.u32 %v424, 7
        %v426 = vsub.s32 0, %v425
        %v427 = vrot.slane %v387, %v426
        %v428 = vmax.f32 %v422, %v427
        %v429 = vsub.f32 %v418, %v428
        %v430 = vmax.f32 %v429, 0.0
        %431 = vset.pattern.permute.xlu0 1
        %432 = vperm.xlu0 %431, %v390
        %v433 = vpop.permute.xlu0 %432
        %v435 = vlaneseq
        %v436 = vshrl.u32 %v435, 7
        %v437 = vsub.s32 1, %v436
        %v438 = vrot.slane %v388, %v437
        %v439 = vmin.f32 %v433, %v438
        %440 = vset.pattern.permute.xlu0 1
        %441 = vperm.xlu0 %440, %v389
        %v442 = vpop.permute.xlu0 %441
        %v444 = vlaneseq
        %v445 = vshrl.u32 %v444, 7
        %v446 = vsub.s32 1, %v445
        %v447 = vrot.slane %v387, %v446
        %v448 = vmax.f32 %v442, %v447
        %v449 = vsub.f32 %v439, %v448
        %v450 = vmax.f32 %v449, 0.0
        %v451 = vmul.f32 %v430, %v450
        %452 = vset.pattern.permute.xlu0 2
        %453 = vperm.xlu0 %452, %v390
        %v454 = vpop.permute.xlu0 %453
        %v456 = vlaneseq
        %v457 = vshrl.u32 %v456, 7
        %v458 = vsub.s32 2, %v457
        %v459 = vrot.slane %v388, %v458
        %v460 = vmin.f32 %v454, %v459
        %461 = vset.pattern.permute.xlu0 2
        %462 = vperm.xlu0 %461, %v389
        %v463 = vpop.permute.xlu0 %462
        %v465 = vlaneseq
        %v466 = vshrl.u32 %v465, 7
        %v467 = vsub.s32 2, %v466
        %v468 = vrot.slane %v387, %v467
        %v469 = vmax.f32 %v463, %v468
        %v470 = vsub.f32 %v460, %v469
        %v471 = vmax.f32 %v470, 0.0
        %v472 = vmul.f32 %v451, %v471
        %474 = vset.pattern.permute.xlu0 0
        %475 = vperm.xlu0 %474, %v401
        %v476 = vpop.permute.xlu0 %475
        %v478 = vlaneseq
        %v479 = vshrl.u32 %v478, 7
        %v480 = vsub.s32 0, %v479
        %v481 = vrot.slane %v408, %v480
        %v482 = vadd.f32 %v476, %v481
        %v483 = vsub.f32 %v482, %v472
        %v484 = vmax.f32 %v483, 1e-08
        %v485 = vrcp.pop %v484
        %v486 = vmul.f32 %v472, %v485
        %v487 = vld [vmem:[%s385] sm:$0x1]
        %v489 = vlaneseq
        %v490 = vshrl.u32 %v489, 7
        %v491 = vsub.s32 0, %v490
        %v492 = vrot.slane %v487, %v491
        %v494 = vmul.f32 %v486, %v492
        %vm495 = vcmask 130048
        %v496 = vsel %vm495, %v494, -inf
        %497 = vmax.xlane.f32.xlu0 %v496
        %v498 = vpop.xlane.xlu0 %497
        %v499 = vlaneseq
        %v500 = vand.u32 %v499, 127
        %vm501 = vcmp.eq.f32.partialorder %v494, %v498
        %v502 = vsel %vm501, %v500, 16
        %v503 = vsel %vm495, %v502, 2147483647
        %v504 = vand.u32 %v503, 65535
        %v505 = vshra.s32 %v503, 16
        %v506 = vcvt.s32.f32 %v504
        %v507 = vcvt.s32.f32 %v505
        %508 = vmin.xlane.f32.xlu0 %v507
        %v509 = vpop.xlane.xlu0 %508
        %vm510 = vcmp.eq.f32.partialorder %v507, %v509
        %v511 = vsel %vm510, %v506, inf
        %512 = vmin.xlane.f32.xlu0 %v511
        %v513 = vpop.xlane.xlu0 %512
        %v514 = vcvt.f32.s32 %v513
        %v515 = vcvt.f32.s32 %v509
        %v516 = vshll.u32 %v515, 16
        %v517 = vadd.s32 %v516, %v514
        %vm518 = vcmp.eq.s32.totalorder %v500, %v517
        %v519 = vsel %vm518, 1, 0
        %v520 = vcvt.s32.f32 %v519
        %v521 = vpack.c.bf16 %v520, %v520
        %v522 = vld [vmem:[%s366] sm:$0xf]
        %v523 = vld [vmem:[%s366 + $0x4] sm:$0xf]
        %v526 = vunpack.c.l.b16 %v522
        %v527 = vunpack.c.l.b16 %v523
        %v528 = vpack.c.b16 %v527, %v526
        %v531 = vsel %vm495, %v521, 0
        %533 = vmatprep.subr.bf16.mxu0 0
        %534 = vmatpush1.bf16.msra.mxu0 0
        %535 = vmatprep.subr.bf16.mxu0 0
        %536 = vmatpush1.bf16.msra.mxu0 0
        %537 = vmatprep.subr.bf16.mxu0 0
        %538 = vmatpush1.bf16.msra.mxu0 0
        %539 = vmatprep.subr.bf16.mxu0 0
        %540 = vmatpush1.bf16.msra.mxu0 0
        %541 = vmatprep.subr.bf16.mxu0 0
        %542 = vmatpush1.bf16.msra.mxu0 0
        %543 = vmatprep.subr.bf16.mxu0 0
        %544 = vmatpush1.bf16.msra.mxu0 0
        %545 = vmatprep.subr.bf16.mxu0 0
        %546 = vmatpush1.bf16.msra.mxu0 0
        %547 = vmatprep.subr.bf16.mxu0 0
        %548 = vmatpush1.bf16.msra.mxu0 %v528
        %549 = vmatprep.subr.bf16.mxu0 0
        %550 = vmatpush2.bf16.msra.mxu0 0
        %551 = vmatprep.subr.bf16.mxu0 0
        %552 = vmatpush2.bf16.msra.mxu0 0
        %553 = vmatprep.subr.bf16.mxu0 0
        %554 = vmatpush2.bf16.msra.mxu0 0
        %555 = vmatprep.subr.bf16.mxu0 0
        %556 = vmatpush2.bf16.msra.mxu0 0
        %557 = vmatprep.subr.bf16.mxu0 0
        %558 = vmatpush2.bf16.msra.mxu0 0
        %559 = vmatprep.subr.bf16.mxu0 0
        %560 = vmatpush2.bf16.msra.mxu0 0
        %561 = vmatprep.subr.bf16.mxu0 0
        %562 = vmatpush2.bf16.msra.mxu0 0
        %563 = vmatprep.subr.bf16.mxu0 0
        %564 = vmatpush2.bf16.msra.mxu0 0
        %565 = vmatprep.mubr.bf16.mxu0 0
        %566 = vmatmul.mubr.bf16.gmra.mxu0 %v531
        %v567 = vpop.f32.mrf.mxu0
        %v568 = vadd.f32 0.0, %v567
        %v569 = vpop.f32.mrf.mxu0
        %v570 = vpop.f32.mrf.mxu0
        %v571 = vpop.f32.mrf.mxu0
        %572 = vdwg.mxu0
        %v573 = vpack.c.bf16 %v568, %v568
        %v574 = vld [vmem:[%s6] sm:$0xf]
        %v575 = vld [vmem:[%s6 + $0x4] sm:$0xf]
        %v576 = vld [vmem:[%s6 + $0x8] sm:$0xf]
        %v577 = vld [vmem:[%s6 + $0xc] sm:$0xf]
        %v578 = vld [vmem:[%s7] sm:$0x1]
        %v580 = vlaneseq
        %v581 = vshrl.u32 %v580, 7
        %v582 = vsub.s32 0, %v581
        %v583 = vrot.slane %v578, %v582
        %v589 = vunpack.c.l.b16 %v574
        %v590 = vunpack.c.l.b16 %v575
        %v591 = vunpack.c.l.b16 %v576
        %v592 = vunpack.c.l.b16 %v577
        %v593 = vpack.c.b16 %v590, %v589
        %v594 = vpack.c.b16 %v592, %v591
        %vm597 = vcmask 261120
        %v599 = vsel %vm597, %v573, 0
        %601 = vmatprep.subr.bf16.mxu0 0
        %602 = vmatpush1.bf16.msra.mxu0 0
        %603 = vmatprep.subr.bf16.mxu0 0
        %604 = vmatpush1.bf16.msra.mxu0 0
        %605 = vmatprep.subr.bf16.mxu0 0
        %606 = vmatpush1.bf16.msra.mxu0 0
        %607 = vmatprep.subr.bf16.mxu0 0
        %608 = vmatpush1.bf16.msra.mxu0 0
        %609 = vmatprep.subr.bf16.mxu0 0
        %610 = vmatpush1.bf16.msra.mxu0 0
        %611 = vmatprep.subr.bf16.mxu0 0
        %612 = vmatpush1.bf16.msra.mxu0 0
        %613 = vmatprep.subr.bf16.mxu0 0
        %614 = vmatpush1.bf16.msra.mxu0 %v594
        %615 = vmatprep.subr.bf16.mxu0 0
        %616 = vmatpush1.bf16.msra.mxu0 %v593
        %617 = vmatprep.subr.bf16.mxu0 0
        %618 = vmatpush2.bf16.msra.mxu0 0
        %619 = vmatprep.subr.bf16.mxu0 0
        %620 = vmatpush2.bf16.msra.mxu0 0
        %621 = vmatprep.subr.bf16.mxu0 0
        %622 = vmatpush2.bf16.msra.mxu0 0
        %623 = vmatprep.subr.bf16.mxu0 0
        %624 = vmatpush2.bf16.msra.mxu0 0
        %625 = vmatprep.subr.bf16.mxu0 0
        %626 = vmatpush2.bf16.msra.mxu0 0
        %627 = vmatprep.subr.bf16.mxu0 0
        %628 = vmatpush2.bf16.msra.mxu0 0
        %629 = vmatprep.subr.bf16.mxu0 0
        %630 = vmatpush2.bf16.msra.mxu0 0
        %631 = vmatprep.subr.bf16.mxu0 0
        %632 = vmatpush2.bf16.msra.mxu0 0
        %633 = vmatprep.mubr.bf16.mxu0 0
        %634 = vmatmul.mubr.bf16.gmra.mxu0 %v599
        %v635 = vpop.f32.mrf.mxu0
        %v636 = vadd.f32 %v583, %v635
        %v637 = vpop.f32.mrf.mxu0
        %v638 = vpop.f32.mrf.mxu0
        %v639 = vpop.f32.mrf.mxu0
        %640 = vdwg.mxu0
        %v641 = vmax.f32 %v636, 0.0
        %v642 = vpack.c.bf16 %v641, %v641
        %vm643 = vcmask 257024
        %644 = vst.msk [vmem:[%s361] sm:$0xf] %vm643, %v642
        %s645 = sand.u32 %s228, 1
        %s646 = scalar_lea.sflag [#allocation3], %s645
        %s647 = sand.u32 %s228, 1
        %s648 = smul.addr %s647, 4
        %s649 = scalar_lea.vmem [#allocation2], %s648
        // Predicated region
        $region53: #{tpu_custom_call.1} parent=51 // pred_check
          %p650 = pneg %p238
        $region54: #{tpu_custom_call.1} parent=51 // pred_check_branch
          %652 = sbr.rel (%p650) target = $region56
        $region55: #{tpu_custom_call.1} parent=51 // pred_region
          %s654 = ssub.s32 64, 64
          %655 = vsyncadd %s646, %s654
          %s656 = smul.addr %s22, 64
          %s657 = scalar_lea.hbm %s8, %s656
          %s659 = sshll.u32 %s649, 4
          %s660 = int_to_ptr.vmem [resolvable:$true] %s659
          %662 = dma.vmem_to_hbm [thread:$0]  %s660, 64, %s657, %s646
        $region56: #{tpu_custom_call.1} parent=51 // pred_fallthru
          _
      $region52: #{tpu_custom_call.1} parent=5 // pred_fallthru
        _
      %p663 = scmp.le.s32.totalorder 2, %s17
      // Predicated region
      $region57: #{tpu_custom_call.1} parent=5 // pred_check
        %p664 = pneg %p663
      $region58: #{tpu_custom_call.1} parent=5 // pred_check_branch
        %666 = sbr.rel (%p664) target = $region60
      $region59: #{tpu_custom_call.1} parent=5 // pred_region
        %s667 = ssub.s32 %s17, 2
        // Predicated region
        $region61: #{tpu_custom_call.1} parent=59 // pred_check
          %p668 = pneg %p244
        $region62: #{tpu_custom_call.1} parent=59 // pred_check_branch
          %670 = sbr.rel (%p668) target = $region64
        $region63: #{tpu_custom_call.1} parent=59 // pred_region
          %s671 = sand.u32 %s229, 1
          %s672 = scalar_lea.sflag [#allocation3], %s671
          %s673 = sand.u32 %s229, 1
          %s674 = smul.addr %s673, 4
          %s675 = scalar_lea.vmem [#allocation2], %s674
          %676 = dma.done %s672, 64
        $region64: #{tpu_custom_call.1} parent=59 // pred_fallthru
          _
      $region60: #{tpu_custom_call.1} parent=5 // pred_fallthru
        _
    $region6: #{tpu_custom_call.1} parent=1 // loop_footer
      %s21 = sadd.s32 1, %s17
    $region7: #{tpu_custom_call.1} parent=1 // loop_footer_branch
      %16 = sbr.rel target = $region3
    $region8: #{tpu_custom_call.1} parent=1 // loop_exit
      _
    %677 = vsyncpa [#allocation3], 1
    %s678 = scalar_lea.sflag [#allocation3], 1
    %679 = vsyncpa %s678, 1

</llo_original>
